<compile_context>
chip_gen: v7x
topology: tpu7x:2x2x1
jax: 0.10.0
libtpu: 0.0.40
codegen_flags: <defaults>
</compile_context>

<pallas_src>
import jax
import jax.numpy as jnp
from jax.experimental import pallas as pl
from jax.experimental.pallas import tpu as pltpu


def _bn_eval_kernel(x_ref, scale_ref, bias_ref, o_ref):
    # x_ref/o_ref:         (row_tile, col_tile) block of x flattened to (N, C*H*W)
    # scale_ref/bias_ref:  (1, col_tile) lane-dense per-column params, broadcast
    #                      over the row (batch) dimension.
    o_ref[...] = scale_ref[...] * x_ref[...] + bias_ref[...]


def _valid_tiles(extent, unit):
    """Tile sizes t with t % unit == 0 and extent % t == 0, plus the full extent
    (full-dim blocks are always layout-legal)."""
    tiles = [t for t in range(unit, extent, unit) if extent % t == 0]
    tiles.append(extent)
    return tiles


def bn_eval_cifar10(x, scale, bias, *,
                    target_tile_bytes=4 << 20,
                    vmem_limit_bytes=48 << 20):
    """BN-eval folded affine: scale.reshape(1,C,1,1) * x + bias.reshape(1,C,1,1).

    x:     (N, C, H, W)
    scale: (1, C) or (C,)
    bias:  (1, C) or (C,)
    """
    # TODO(synk): in a real model this affine should be fused into the adjacent
    # conv (or left to XLA) to avoid a standalone HBM round trip.
    N, C, H, W = x.shape
    HW = H * W
    rows, cols = N, C * HW
    dtype = x.dtype
    itemsize = jnp.dtype(dtype).itemsize
    # Sublane packing: 8 rows/vreg for 32-bit, 16 for 16-bit, 32 for 8-bit.
    sublane = 8 * max(1, 4 // itemsize)
    lane = 128

    scale_c = jnp.asarray(scale, dtype=dtype).reshape(C)
    bias_c = jnp.asarray(bias, dtype=dtype).reshape(C)
    # Lane-dense per-column params: column j = c*HW + hw  ->  param[c].
    scale_row = jnp.repeat(scale_c, HW).reshape(1, cols)
    bias_row = jnp.repeat(bias_c, HW).reshape(1, cols)

    # Lane-dense 2-D view: (N, C*H*W).
    x2d = x.reshape(rows, cols)

    # --- tile selection ------------------------------------------------------
    row_tiles = _valid_tiles(rows, sublane)
    col_tiles = _valid_tiles(cols, lane)

    best_key, best = None, None
    for rt in row_tiles:
        for ct in col_tiles:
            tile_bytes = rt * ct * itemsize
            steps = (rows // rt) * (cols // ct)
            # Prefer: tiles that fit the budget, then >= 2 grid steps (lets the
            # v7x megacore split the stream across both TensorCores; negligible
            # cost on 1-TC chips), then the largest tile (amortizes per-step
            # overhead for this mem-bound op).
            key = (tile_bytes <= target_tile_bytes, steps >= 2, tile_bytes)
            if best_key is None or key > best_key:
                best_key, best = key, (rt, ct)
    row_tile, col_tile = best

    ni = rows // row_tile
    nj = cols // col_tile

    # Grid: columns outer, rows inner -> the scale/bias block index only changes
    # on the outer axis, so the params are not re-DMA'd every step.
    out2d = pl.pallas_call(
        _bn_eval_kernel,
        out_shape=jax.ShapeDtypeStruct((rows, cols), dtype),
        grid_spec=pltpu.PrefetchScalarGridSpec(
            num_scalar_prefetch=0,
            grid=(nj, ni),
            in_specs=[
                pl.BlockSpec((row_tile, col_tile), lambda j, i: (i, j)),
                pl.BlockSpec((1, col_tile), lambda j, i: (0, j)),
                pl.BlockSpec((1, col_tile), lambda j, i: (0, j)),
            ],
            out_specs=pl.BlockSpec((row_tile, col_tile), lambda j, i: (i, j)),
        ),
        compiler_params=pltpu.CompilerParams(
            dimension_semantics=("parallel", "parallel"),
            vmem_limit_bytes=vmem_limit_bytes,
        ),
    )(x2d, scale_row, bias_row)

    return out2d.reshape(N, C, H, W)


if __name__ == "__main__":
    key = jax.random.PRNGKey(0)
    kx, ks, kb = jax.random.split(key, 3)

    N, C, H, W = 2, 4, 16, 16
    x = jax.random.normal(kx, (N, C, H, W), dtype=jnp.float32)
    # Deterministic "BN eval" folded parameters (shape (1, C) as in the module).
    scale = jax.random.normal(ks, (1, C), dtype=jnp.float32) * 0.5 + 1.0
    bias = jax.random.normal(kb, (1, C), dtype=jnp.float32) * 0.1

    out = bn_eval_cifar10(x, scale, bias)
    out = jax.block_until_ready(out)

    # Pure-JAX reference (matches PyTorch: scale.unsqueeze(2).unsqueeze(3) * x + bias...)
    ref = scale.reshape(1, C, 1, 1) * x + bias.reshape(1, C, 1, 1)
    assert out.shape == x.shape and out.dtype == x.dtype
    assert jnp.allclose(out, ref, atol=1e-6, rtol=1e-6), "mismatch vs reference"

    print("KERNEL_OK")
</pallas_src>

<mosaic_0001>
module attributes {stable_mosaic.version = 11 : i64} {
  func.func @_bn_eval_kernel(%arg0: i32, %arg1: i32, %arg2: memref<2x512xf32, #tpu.memory_space<vmem>>, %arg3: memref<1x512xf32, #tpu.memory_space<vmem>>, %arg4: memref<1x512xf32, #tpu.memory_space<vmem>>, %arg5: memref<2x512xf32, #tpu.memory_space<vmem>>) attributes {dimension_semantics = [#tpu.dimension_semantics<parallel>, #tpu.dimension_semantics<parallel>], iteration_bounds = array<i64: 2, 1>, scalar_prefetch = 0 : i64, scratch_operands = 0 : i64, tpu.core_type = #tpu.core_type<tc>, window_params = [{transform_indices = @transform_0, window_bounds = array<i64: 2, 512>}, {transform_indices = @transform_1, window_bounds = array<i64: 1, 512>}, {transform_indices = @transform_2, window_bounds = array<i64: 1, 512>}, {transform_indices = @transform_3, window_bounds = array<i64: 2, 512>}]} {
    %c0 = arith.constant 0 : index
    %c0_0 = arith.constant 0 : index
    %0 = vector.load %arg3[%c0, %c0_0] : memref<1x512xf32, #tpu.memory_space<vmem>>, vector<1x512xf32>
    %c0_1 = arith.constant 0 : index
    %c0_2 = arith.constant 0 : index
    %1 = vector.load %arg2[%c0_1, %c0_2] : memref<2x512xf32, #tpu.memory_space<vmem>>, vector<2x512xf32>
    %2 = vector.broadcast %0 : vector<1x512xf32> to vector<2x512xf32>
    %3 = arith.mulf %2, %1 : vector<2x512xf32>
    %c0_3 = arith.constant 0 : index
    %c0_4 = arith.constant 0 : index
    %4 = vector.load %arg4[%c0_3, %c0_4] : memref<1x512xf32, #tpu.memory_space<vmem>>, vector<1x512xf32>
    %5 = vector.broadcast %4 : vector<1x512xf32> to vector<2x512xf32>
    %6 = arith.addf %3, %5 : vector<2x512xf32>
    %c0_5 = arith.constant 0 : index
    %c0_6 = arith.constant 0 : index
    %7 = vector.load %arg5[%c0_5, %c0_6] : memref<2x512xf32, #tpu.memory_space<vmem>>, vector<2x512xf32>
    tpu.vector_store %arg5[%c0_5, %c0_6], %6 {strides = array<i32>} : memref<2x512xf32, #tpu.memory_space<vmem>>, vector<2x512xf32>,
    return
  }
  func.func @transform_0(%arg0: i32, %arg1: i32) -> (i32, i32) {
    %c0_i32 = arith.constant 0 : i32
    return %arg1, %arg0 : i32, i32
  }
  func.func @transform_1(%arg0: i32, %arg1: i32) -> (i32, i32) {
    %c0_i32 = arith.constant 0 : i32
    %c0_i32_0 = arith.constant 0 : i32
    return %c0_i32, %arg0 : i32, i32
  }
  func.func @transform_2(%arg0: i32, %arg1: i32) -> (i32, i32) {
    %c0_i32 = arith.constant 0 : i32
    %c0_i32_0 = arith.constant 0 : i32
    return %c0_i32, %arg0 : i32, i32
  }
  func.func @transform_3(%arg0: i32, %arg1: i32) -> (i32, i32) {
    %c0_i32 = arith.constant 0 : i32
    return %arg1, %arg0 : i32, i32
  }
}

</mosaic_0001>

<llo_original>
// kernel: tpu_custom_call.1
$region0: #{tpu_custom_call.1}
  #allocation0 [shape = 'u32[]', space=smem, size = 0x4, offset = 0x4, fixed_abs, tag = 'smem constant byte address 0x4 - core index']
  #allocation1 [shape = 'u32[144,128]{1,0:T(1,128)}', space=vmem, size = 0x12000, scoped, tag = 'internal scratch']
  %s0 = inlined_call_operand.hbm [shape: f32[2,1024], index: 0, kind: input, shape index: {}]
  %s1 = inlined_call_operand.hbm [shape: f32[1,1024], index: 1, kind: input, shape index: {}]
  %s2 = inlined_call_operand.hbm [shape: f32[1,1024], index: 2, kind: input, shape index: {}]
  %s3 = inlined_call_operand.hbm [shape: f32[2,1024], index: 3, kind: output, shape index: {}]
  %s4 = sld [smem:[#allocation0]]
  $region57: #{tpu_custom_call.1} parent=0
    _
  %s6 = ssub.s32 1, %s4
  %s7 = scalar_select 0, %s6, %s4
  $region1: #{tpu_custom_call.1} parent=0
    #allocation2 [shape = 'u8[8192]{0}', space=vmem, size = 0x2000, scoped, tag = 'input window, operand 0']
    #allocation3 [shape = 's32[2]{0}', space=sflag, size = 0x8, scoped, tag = 'scoped memory for tpu_custom_call.1']
    #allocation4 [shape = 's32[2]{0}', space=sflag, size = 0x8, scoped, tag = 'scoped memory for tpu_custom_call.1']
    #allocation5 [shape = 'u8[4096]{0}', space=vmem, size = 0x1000, scoped, tag = 'input window, operand 1']
    #allocation6 [shape = 's32[2]{0}', space=sflag, size = 0x8, scoped, tag = 'scoped memory for tpu_custom_call.1']
    #allocation7 [shape = 'u8[4096]{0}', space=vmem, size = 0x1000, scoped, tag = 'input window, operand 2']
    #allocation8 [shape = 'u8[8192]{0}', space=vmem, size = 0x2000, scoped, tag = 'output window, operand 0']
    %8 = vsyncpa [#allocation3], 0
    %s9 = scalar_lea.sflag [#allocation3], 1
    %10 = vsyncpa %s9, 0
    %11 = vsyncpa [#allocation6], 0
    %s12 = scalar_lea.sflag [#allocation6], 1
    %13 = vsyncpa %s12, 0
    %14 = vsyncpa [#allocation4], 0
    %s15 = scalar_lea.sflag [#allocation4], 1
    %16 = vsyncpa %s15, 0
    loop: start=0, step=1, limit=4
    $region2: #{tpu_custom_call.1} parent=1 // loop_pre_header
      _
    $region3: #{tpu_custom_call.1} parent=1 // loop_header
      %s18 = sphi 0, %s22
      %p19 = scmp.ge.s32.totalorder %s18, 4
      %s25 = sphi 0, %s37
      %s26 = sphi 0, %s33
      %s27 = sphi 0, %s25
      %s28 = sphi 0, %s26
      %s29 = sphi 0, %s27
      %s30 = sphi 0, %s28
      %s42 = sphi 0, %s44
      %s45 = sphi 0, %s42
      %s46 = sphi 0, %s45
      %s62 = sphi 0, %s46
      %s68 = sphi 0, %s70
      %s71 = sphi 0, %s68
      %s72 = sphi 0, %s71
      %s88 = sphi 0, %s72
      %s94 = sphi 0, %s96
      %s97 = sphi 0, %s94
      %s98 = sphi 0, %s97
      %s114 = sphi 0, %s98
      %s122 = sphi 0, %s124
      %s125 = sphi 0, %s122
      %s126 = sphi 0, %s125
      %s142 = sphi 0, %s126
    $region4: #{tpu_custom_call.1} parent=1 // loop_header_branch
      %21 = sbr.rel (%p19) target = $region8
    $region5: #{tpu_custom_call.1} parent=1 // loop_body
      %s23 = ssub.s32 %s18, 1
      %s24 = ssub.s32 %s18, 2
      %s31 = sadd.s32 1, %s26
      %p32 = scmp.ge.s32.totalorder %s31, 1
      %s33 = scalar_select %p32, 0, %s31
      %s34 = sadd.s32 1, %s25
      %s35 = scalar_select %p32, %s34, %s25
      %p36 = scmp.ge.s32.totalorder %s35, 2
      %s37 = scalar_select %p36, 0, %s35
      %s38 = ssub.s32 %s26, %s33
      %s39 = ssub.s32 %s25, %s37
      %s40 = sor.u32 %s38, %s39
      %p41 = scmp.eq.s32.totalorder %s40, 0
      %s43 = sadd.s32 %s42, 1
      %s44 = scalar_select %p41, %s42, %s43
      %p47 = pneg %p41
      %p48 = scmp.eq.s32.totalorder %s18, 1
      %p49 = por %p47, %p48
      %p50 = scmp.ne.s32.totalorder %s42, %s45
      %p51 = scmp.eq.s32.totalorder %s18, 0
      %p52 = por %p50, %p51
      %p53 = scmp.ne.s32.totalorder %s42, %s45
      %p54 = scmp.eq.s32.totalorder %s23, 1
      %p55 = por %p53, %p54
      %p56 = scmp.ne.s32.totalorder %s45, %s46
      %p57 = scmp.eq.s32.totalorder %s23, 0
      %p58 = por %p56, %p57
      %p59 = scmp.ne.s32.totalorder %s45, %s46
      %p60 = scmp.eq.s32.totalorder %s24, 1
      %p61 = por %p59, %p60
      %p63 = scmp.ne.s32.totalorder %s46, %s62
      %p64 = scmp.eq.s32.totalorder %s24, 0
      %p65 = por %p63, %p64
      %s66 = ssub.s32 %s25, %s37
      %p67 = scmp.eq.s32.totalorder %s66, 0
      %s69 = sadd.s32 %s68, 1
      %s70 = scalar_select %p67, %s68, %s69
      %p73 = pneg %p67
      %p74 = scmp.eq.s32.totalorder %s18, 1
      %p75 = por %p73, %p74
      %p76 = scmp.ne.s32.totalorder %s68, %s71
      %p77 = scmp.eq.s32.totalorder %s18, 0
      %p78 = por %p76, %p77
      %p79 = scmp.ne.s32.totalorder %s68, %s71
      %p80 = scmp.eq.s32.totalorder %s23, 1
      %p81 = por %p79, %p80
      %p82 = scmp.ne.s32.totalorder %s71, %s72
      %p83 = scmp.eq.s32.totalorder %s23, 0
      %p84 = por %p82, %p83
      %p85 = scmp.ne.s32.totalorder %s71, %s72
      %p86 = scmp.eq.s32.totalorder %s24, 1
      %p87 = por %p85, %p86
      %p89 = scmp.ne.s32.totalorder %s72, %s88
      %p90 = scmp.eq.s32.totalorder %s24, 0
      %p91 = por %p89, %p90
      %s92 = ssub.s32 %s25, %s37
      %p93 = scmp.eq.s32.totalorder %s92, 0
      %s95 = sadd.s32 %s94, 1
      %s96 = scalar_select %p93, %s94, %s95
      %p99 = pneg %p93
      %p100 = scmp.eq.s32.totalorder %s18, 1
      %p101 = por %p99, %p100
      %p102 = scmp.ne.s32.totalorder %s94, %s97
      %p103 = scmp.eq.s32.totalorder %s18, 0
      %p104 = por %p102, %p103
      %p105 = scmp.ne.s32.totalorder %s94, %s97
      %p106 = scmp.eq.s32.totalorder %s23, 1
      %p107 = por %p105, %p106
      %p108 = scmp.ne.s32.totalorder %s97, %s98
      %p109 = scmp.eq.s32.totalorder %s23, 0
      %p110 = por %p108, %p109
      %p111 = scmp.ne.s32.totalorder %s97, %s98
      %p112 = scmp.eq.s32.totalorder %s24, 1
      %p113 = por %p111, %p112
      %p115 = scmp.ne.s32.totalorder %s98, %s114
      %p116 = scmp.eq.s32.totalorder %s24, 0
      %p117 = por %p115, %p116
      %s118 = ssub.s32 %s26, %s33
      %s119 = ssub.s32 %s25, %s37
      %s120 = sor.u32 %s118, %s119
      %p121 = scmp.eq.s32.totalorder %s120, 0
      %s123 = sadd.s32 %s122, 1
      %s124 = scalar_select %p121, %s122, %s123
      %p127 = pneg %p121
      %p128 = scmp.eq.s32.totalorder %s18, 1
      %p129 = por %p127, %p128
      %p130 = scmp.ne.s32.totalorder %s122, %s125
      %p131 = scmp.eq.s32.totalorder %s18, 0
      %p132 = por %p130, %p131
      %p133 = scmp.ne.s32.totalorder %s122, %s125
      %p134 = scmp.eq.s32.totalorder %s23, 1
      %p135 = por %p133, %p134
      %p136 = scmp.ne.s32.totalorder %s125, %s126
      %p137 = scmp.eq.s32.totalorder %s23, 0
      %p138 = por %p136, %p137
      %p139 = scmp.ne.s32.totalorder %s125, %s126
      %p140 = scmp.eq.s32.totalorder %s24, 1
      %p141 = por %p139, %p140
      %p143 = scmp.ne.s32.totalorder %s126, %s142
      %p144 = scmp.eq.s32.totalorder %s24, 0
      %p145 = por %p143, %p144
      %p146 = scmp.le.s32.totalorder 1, %s18
      %p147 = scmp.lt.s32.totalorder %s18, 3
      %p148 = pnand %p146, %p147
      %p149 = pneg %p148
      // Predicated region
      $region9: #{tpu_custom_call.1} parent=5 // pred_check
        _
      $region10: #{tpu_custom_call.1} parent=5 // pred_check_branch
        %151 = sbr.rel (%p148) target = $region12
      $region11: #{tpu_custom_call.1} parent=5 // pred_region
        %s152 = ssub.s32 %s18, 1
      $region12: #{tpu_custom_call.1} parent=5 // pred_fallthru
        _
      %p153 = scmp.lt.s32.totalorder %s18, 2
      // Predicated region
      $region13: #{tpu_custom_call.1} parent=5 // pred_check
        %p154 = pneg %p153
      $region14: #{tpu_custom_call.1} parent=5 // pred_check_branch
        %156 = sbr.rel (%p154) target = $region16
      $region15: #{tpu_custom_call.1} parent=5 // pred_region
        // Predicated region
        $region17: #{tpu_custom_call.1} parent=15 // pred_check
          %p157 = pneg %p52
        $region18: #{tpu_custom_call.1} parent=15 // pred_check_branch
          %159 = sbr.rel (%p157) target = $region20
        $region19: #{tpu_custom_call.1} parent=15 // pred_region
          %s160 = sand.u32 %s42, 1
          %s161 = scalar_lea.sflag [#allocation3], %s160
          %s162 = sand.u32 %s42, 1
          %s163 = smul.addr %s162, 8
          %s164 = scalar_lea.vmem [#allocation2], %s163
          %s165 = smul.u32 4, %s25
          %s167 = ssub.s32 128, 128
          %168 = vsyncadd %s161, %s167
          %s169 = smul.addr %s26, 8
          %s170 = sadd.s32 %s165, %s169
          %s171 = smul.addr %s170, 32
          %s172 = scalar_lea.hbm %s0, %s171
          %s174 = sshll.u32 %s164, 4
          %s175 = int_to_ptr.vmem [resolvable:$true] %s174
          %177 = dma.hbm_to_vmem [thread:$0]  %s172, 128, %s175, %s161
        $region20: #{tpu_custom_call.1} parent=15 // pred_fallthru
          _
        // Predicated region
        $region21: #{tpu_custom_call.1} parent=15 // pred_check
          %p178 = pneg %p78
        $region22: #{tpu_custom_call.1} parent=15 // pred_check_branch
          %180 = sbr.rel (%p178) target = $region24
        $region23: #{tpu_custom_call.1} parent=15 // pred_region
          %s181 = sand.u32 %s18, 1
          %s182 = scalar_lea.sflag [#allocation6], %s181
          %s183 = sand.u32 %s68, 1
          %s184 = smul.addr %s183, 4
          %s185 = scalar_lea.vmem [#allocation5], %s184
          %s186 = smul.u32 4, %s25
          %s188 = ssub.s32 64, 64
          %189 = vsyncadd %s182, %s188
          %s190 = smul.addr %s186, 16
          %s191 = scalar_lea.hbm %s1, %s190
          %s193 = sshll.u32 %s185, 4
          %s194 = int_to_ptr.vmem [resolvable:$true] %s193
          %196 = dma.hbm_to_vmem [thread:$0]  %s191, 64, %s194, %s182
        $region24: #{tpu_custom_call.1} parent=15 // pred_fallthru
          _
        // Predicated region
        $region25: #{tpu_custom_call.1} parent=15 // pred_check
          %p197 = pneg %p104
        $region26: #{tpu_custom_call.1} parent=15 // pred_check_branch
          %199 = sbr.rel (%p197) target = $region28
        $region27: #{tpu_custom_call.1} parent=15 // pred_region
          %s200 = sand.u32 %s18, 1
          %s201 = scalar_lea.sflag [#allocation6], %s200
          %s202 = sand.u32 %s94, 1
          %s203 = smul.addr %s202, 4
          %s204 = scalar_lea.vmem [#allocation7], %s203
          %s205 = smul.u32 4, %s25
          %s207 = ssub.s32 64, 64
          %208 = vsyncadd %s201, %s207
          %s209 = smul.addr %s205, 16
          %s210 = scalar_lea.hbm %s2, %s209
          %s212 = sshll.u32 %s204, 4
          %s213 = int_to_ptr.vmem [resolvable:$true] %s212
          %215 = dma.hbm_to_vmem [thread:$0]  %s210, 64, %s213, %s201
        $region28: #{tpu_custom_call.1} parent=15 // pred_fallthru
          _
      $region16: #{tpu_custom_call.1} parent=5 // pred_fallthru
        _
      %p216 = scmp.le.s32.totalorder 1, %s18
      %p217 = scmp.lt.s32.totalorder %s18, 3
      %p218 = pnand %p216, %p217
      %p219 = pneg %p218
      // Predicated region
      $region29: #{tpu_custom_call.1} parent=5 // pred_check
        _
      $region30: #{tpu_custom_call.1} parent=5 // pred_check_branch
        %221 = sbr.rel (%p218) target = $region32
      $region31: #{tpu_custom_call.1} parent=5 // pred_region
        %s222 = ssub.s32 %s18, 1
        %s223 = sand.u32 %s45, 1
        %s224 = scalar_lea.sflag [#allocation3], %s223
        %s225 = sand.u32 %s45, 1
        %s226 = smul.addr %s225, 8
        %s227 = scalar_lea.vmem [#allocation2], %s226
        // Predicated region
        $region33: #{tpu_custom_call.1} parent=31 // pred_check
          %p228 = pneg %p58
        $region34: #{tpu_custom_call.1} parent=31 // pred_check_branch
          %230 = sbr.rel (%p228) target = $region36
        $region35: #{tpu_custom_call.1} parent=31 // pred_region
          %231 = dma.done %s224, 128
        $region36: #{tpu_custom_call.1} parent=31 // pred_fallthru
          _
        %s232 = sand.u32 %s23, 1
        %s233 = scalar_lea.sflag [#allocation6], %s232
        %s234 = sand.u32 %s71, 1
        %s235 = smul.addr %s234, 4
        %s236 = scalar_lea.vmem [#allocation5], %s235
        // Predicated region
        $region37: #{tpu_custom_call.1} parent=31 // pred_check
          %p237 = pneg %p84
        $region38: #{tpu_custom_call.1} parent=31 // pred_check_branch
          %239 = sbr.rel (%p237) target = $region40
        $region39: #{tpu_custom_call.1} parent=31 // pred_region
          %240 = dma.done %s233, 64
        $region40: #{tpu_custom_call.1} parent=31 // pred_fallthru
          _
        %s241 = sand.u32 %s23, 1
        %s242 = scalar_lea.sflag [#allocation6], %s241
        %s243 = sand.u32 %s97, 1
        %s244 = smul.addr %s243, 4
        %s245 = scalar_lea.vmem [#allocation7], %s244
        // Predicated region
        $region41: #{tpu_custom_call.1} parent=31 // pred_check
          %p246 = pneg %p110
        $region42: #{tpu_custom_call.1} parent=31 // pred_check_branch
          %248 = sbr.rel (%p246) target = $region44
        $region43: #{tpu_custom_call.1} parent=31 // pred_region
          %249 = dma.done %s242, 64
        $region44: #{tpu_custom_call.1} parent=31 // pred_fallthru
          _
        %s250 = sand.u32 %s45, 1
        %s251 = scalar_lea.sflag [#allocation3], %s250
        %s252 = sand.u32 %s45, 1
        %s253 = smul.addr %s252, 8
        %s254 = scalar_lea.vmem [#allocation2], %s253
        %p255 = pneg %p58
        %p256 = pneg %p55
        %s257 = sand.u32 %s23, 1
        %s258 = scalar_lea.sflag [#allocation6], %s257
        %s259 = sand.u32 %s71, 1
        %s260 = smul.addr %s259, 4
        %s261 = scalar_lea.vmem [#allocation5], %s260
        %p262 = pneg %p84
        %p263 = pneg %p81
        %s264 = sand.u32 %s23, 1
        %s265 = scalar_lea.sflag [#allocation6], %s264
        %s266 = sand.u32 %s97, 1
        %s267 = smul.addr %s266, 4
        %s268 = scalar_lea.vmem [#allocation7], %s267
        %p269 = pneg %p110
        %p270 = pneg %p107
        %p271 = pneg %p138
        %p272 = pneg %p135
        %s273 = sand.u32 %s125, 1
        %s274 = scalar_lea.sflag [#allocation4], %s273
        %s275 = sand.u32 %s125, 1
        %s276 = smul.addr %s275, 8
        %s277 = scalar_lea.vmem [#allocation8], %s276
        %s278 = smul.u32 4, %s27
        %s279 = smul.u32 4, %s27
        %s280 = smul.u32 4, %s27
        %s281 = smul.u32 4, %s27
        %v282 = vld [vmem:[%s236] sm:$0xf]
        %v283 = vld [vmem:[%s227] sm:$0xff]
        %v285 = vlaneseq
        %v286 = vshrl.u32 %v285, 7
        %v287 = vsub.s32 0, %v286
        %v288 = vrot.slane %v282, %v287
        %v289 = vlaneseq
        %v290 = vshrl.u32 %v289, 7
        %v291 = vsub.s32 1, %v290
        %v292 = vrot.slane %v282, %v291
        %v293 = vlaneseq
        %v294 = vshrl.u32 %v293, 7
        %v295 = vsub.s32 2, %v294
        %v296 = vrot.slane %v282, %v295
        %v297 = vlaneseq
        %v298 = vshrl.u32 %v297, 7
        %v299 = vsub.s32 3, %v298
        %v300 = vrot.slane %v282, %v299
        %v306 = vcombine.high %v283, %v283
        %v308 = vunpack.c.l.s4 1983009808
        %v309 = vunpack.c.0.s8 %v308
        %v310 = vlaneseq
        %v311 = vshrl.u32 %v310, 7
        %v312 = vsub.s32 %v309, %v311
        %v313 = vrot.slane %v283, %v312
        %v315 = vunpack.c.l.s4 1983009808
        %v316 = vunpack.c.0.s8 %v315
        %v317 = vlaneseq
        %v318 = vshrl.u32 %v317, 7
        %v319 = vsub.s32 %v316, %v318
        %v320 = vrot.slane %v306, %v319
        %v321 = vcombine.high %v313, %v313
        %v322 = vcombine.high %v320, %v320
        %v327 = vmul.f32 %v288, %v313
        %v328 = vmul.f32 %v292, %v321
        %v329 = vmul.f32 %v296, %v320
        %v330 = vmul.f32 %v300, %v322
        %v331 = vld [vmem:[%s245] sm:$0xf]
        %v333 = vlaneseq
        %v334 = vshrl.u32 %v333, 7
        %v335 = vsub.s32 0, %v334
        %v336 = vrot.slane %v331, %v335
        %v337 = vlaneseq
        %v338 = vshrl.u32 %v337, 7
        %v339 = vsub.s32 1, %v338
        %v340 = vrot.slane %v331, %v339
        %v341 = vlaneseq
        %v342 = vshrl.u32 %v341, 7
        %v343 = vsub.s32 2, %v342
        %v344 = vrot.slane %v331, %v343
        %v345 = vlaneseq
        %v346 = vshrl.u32 %v345, 7
        %v347 = vsub.s32 3, %v346
        %v348 = vrot.slane %v331, %v347
        %v353 = vadd.f32 %v327, %v336
        %v354 = vadd.f32 %v328, %v340
        %v355 = vadd.f32 %v329, %v344
        %v356 = vadd.f32 %v330, %v348
        %v361 = vcombine.low %v353, %v354
        %v362 = vcombine.low %v355, %v356
        %v364 = vunpack.c.l.s4 1983009808
        %v365 = vunpack.c.0.s8 %v364
        %v366 = vlaneseq
        %v367 = vshrl.u32 %v366, 7
        %v368 = vsub.s32 %v365, %v367
        %v369 = vrot.slane %v361, %v368
        %v371 = vunpack.c.l.s4 1983009808
        %v372 = vunpack.c.0.s8 %v371
        %v373 = vlaneseq
        %v374 = vshrl.u32 %v373, 7
        %v375 = vsub.s32 %v372, %v374
        %v376 = vrot.slane %v362, %v375
        %v377 = vcombine.low %v369, %v376
        %379 = vst [vmem:[%s277] sm:$0xff] %v377
        %s380 = sand.u32 %s125, 1
        %s381 = scalar_lea.sflag [#allocation4], %s380
        %s382 = sand.u32 %s125, 1
        %s383 = smul.addr %s382, 8
        %s384 = scalar_lea.vmem [#allocation8], %s383
        // Predicated region
        $region45: #{tpu_custom_call.1} parent=31 // pred_check
          %p385 = pneg %p135
        $region46: #{tpu_custom_call.1} parent=31 // pred_check_branch
          %387 = sbr.rel (%p385) target = $region48
        $region47: #{tpu_custom_call.1} parent=31 // pred_region
          %s388 = smul.u32 4, %s27
          %s390 = ssub.s32 128, 128
          %391 = vsyncadd %s381, %s390
          %s392 = smul.addr %s28, 8
          %s393 = sadd.s32 %s388, %s392
          %s394 = smul.addr %s393, 32
          %s395 = scalar_lea.hbm %s3, %s394
          %s397 = sshll.u32 %s384, 4
          %s398 = int_to_ptr.vmem [resolvable:$true] %s397
          %400 = dma.vmem_to_hbm [thread:$0]  %s398, 128, %s395, %s381
        $region48: #{tpu_custom_call.1} parent=31 // pred_fallthru
          _
      $region32: #{tpu_custom_call.1} parent=5 // pred_fallthru
        _
      %p401 = scmp.le.s32.totalorder 2, %s18
      // Predicated region
      $region49: #{tpu_custom_call.1} parent=5 // pred_check
        %p402 = pneg %p401
      $region50: #{tpu_custom_call.1} parent=5 // pred_check_branch
        %404 = sbr.rel (%p402) target = $region52
      $region51: #{tpu_custom_call.1} parent=5 // pred_region
        %s405 = ssub.s32 %s18, 2
        // Predicated region
        $region53: #{tpu_custom_call.1} parent=51 // pred_check
          %p406 = pneg %p141
        $region54: #{tpu_custom_call.1} parent=51 // pred_check_branch
          %408 = sbr.rel (%p406) target = $region56
        $region55: #{tpu_custom_call.1} parent=51 // pred_region
          %s409 = sand.u32 %s126, 1
          %s410 = scalar_lea.sflag [#allocation4], %s409
          %s411 = sand.u32 %s126, 1
          %s412 = smul.addr %s411, 8
          %s413 = scalar_lea.vmem [#allocation8], %s412
          %414 = dma.done %s410, 128
        $region56: #{tpu_custom_call.1} parent=51 // pred_fallthru
          _
      $region52: #{tpu_custom_call.1} parent=5 // pred_fallthru
        _
    $region6: #{tpu_custom_call.1} parent=1 // loop_footer
      %s22 = sadd.s32 1, %s18
    $region7: #{tpu_custom_call.1} parent=1 // loop_footer_branch
      %17 = sbr.rel target = $region3
    $region8: #{tpu_custom_call.1} parent=1 // loop_exit
      _
    %415 = vsyncpa [#allocation3], 1
    %s416 = scalar_lea.sflag [#allocation3], 1
    %417 = vsyncpa %s416, 1
    %418 = vsyncpa [#allocation6], 1
    %s419 = scalar_lea.sflag [#allocation6], 1
    %420 = vsyncpa %s419, 1
    %421 = vsyncpa [#allocation4], 1
    %s422 = scalar_lea.sflag [#allocation4], 1
    %423 = vsyncpa %s422, 1

</llo_original>
